<compile_context>
chip_gen: v6e
topology: v6e:2x2x1
jax: 0.10.0
libtpu: 0.0.40
codegen_flags: <defaults>
</compile_context>

<pallas_src>
import functools

import jax
import jax.numpy as jnp
import numpy as np
from jax import lax
from jax.experimental import pallas as pl
from jax.experimental.pallas import tpu as pltpu


_NROWS = 8     # 4 segments x 2 lane-halves -> every sublane does real work
_BIG = 1e30    # mask sentinel (assumes |v| << 1e30)


def _fold(x, op):
    """Combine the paired half-segment rows (k, k+4) of an (8, 1) partial.

    Row k and row k+4 hold the two lane-halves of segment k; the fold returns
    op(x[k], x[k+4]) duplicated across the pair.  Single-vreg XLU roll + VPU op.
    """
    return op(x, pltpu.roll(x, shift=4, axis=0))


def _bisect(lo, hi, body, n_iter, full_unroll):
    if full_unroll:                      # small tile: straight-line code
        for _ in range(n_iter):
            lo, hi = body(lo, hi)
        return lo, hi
    # large tile: keep the nh-wide body in a loop (carry is just two (8,1)s)
    return lax.fori_loop(0, n_iter, lambda _, c: body(*c), (lo, hi), unroll=2)


def _ml_robust_kernel(v_ref, out_ref, *, geometry, size, inv_pmf, n, half_min,
                      nh, n_iter, full_unroll):
    # ------------------------- one-time setup ------------------------------
    lane = lax.broadcasted_iota(jnp.int32, (_NROWS, nh), 1)
    row = lax.broadcasted_iota(jnp.int32, (_NROWS, nh), 0)

    n_half = n // 2
    seg = row & 3                                   # rows k, k+4 -> segment k
    gidx = lane + jnp.where(row >= 4, nh, 0)        # global element index
    # Segment windows:
    #   seg 0: v[:half_min]  seg 1: v[:n]  seg 2: v[:n//2]  seg 3: v[n//2:]
    start = jnp.where(seg == 3, n_half, 0)
    end = jnp.where(seg == 0, half_min,
          jnp.where(seg == 2, n_half, n))
    maskb = (gidx >= start) & (gidx < end)          # (8, nh) bool

    v2 = v_ref[...].astype(jnp.float32)             # (2, nh) lane-halves of v
    V = jnp.where(row < 4, v2[0:1, :], v2[1:2, :])  # setup-only broadcast

    big = jnp.float32(_BIG)
    # Mask folded into the data ONCE; masked lanes become -BIG so that both
    # `Vm > mid` and `relu(Vm - mid)` ignore them.  Vm is the ONLY full-width
    # array kept live through the bisection loops.
    Vm = jnp.where(maskb, V, -big)

    maskf = maskb.astype(jnp.float32)
    m = _fold(jnp.sum(maskf, axis=-1, keepdims=True), jnp.add)   # segment size
    m_safe = jnp.maximum(m, 1.0)
    nonempty = m > 0.5

    seg_max = _fold(jnp.max(Vm, axis=-1, keepdims=True), jnp.maximum)
    seg_min = _fold(jnp.min(jnp.where(maskb, V, big), axis=-1, keepdims=True),
                    jnp.minimum)
    seg_max = jnp.where(nonempty, seg_max, 0.0)
    seg_min = jnp.where(nonempty, seg_min, 0.0)

    size_f = jnp.float32(size)
    tiny = jnp.float32(1e-30)

    if geometry == 'cvar':
        # Rockafellar-Uryasev dual of the capped-simplex LP (exact by duality):
        #   RL(u) = min_tau  tau + sum_i relu(u_i - tau) / (size * m)
        denom = size_f * m_safe                                  # (8, 1)

        def body(lo, hi):
            mid = 0.5 * (lo + hi)
            cnt = _fold(jnp.sum((Vm > mid).astype(jnp.float32),
                                axis=-1, keepdims=True), jnp.add)
            go_right = cnt > denom                  # subgradient < 0 -> move up
            return jnp.where(go_right, mid, lo), jnp.where(go_right, hi, mid)

        lo, hi = _bisect(seg_min, seg_max, body, n_iter, full_unroll)
        tau = 0.5 * (lo + hi)
        excess = _fold(jnp.sum(jnp.maximum(Vm - tau, 0.0),
                               axis=-1, keepdims=True), jnp.add)
        losses = tau + excess / denom                             # (8, 1)
    else:  # 'chi-square'
        V0 = jnp.where(maskb, V, 0.0)                             # setup-only
        mean_v = _fold(jnp.sum(V0, axis=-1, keepdims=True), jnp.add) / m_safe
        dv = jnp.where(maskb, V - mean_v, 0.0)                    # setup-only
        var_v = _fold(jnp.sum(dv * dv, axis=-1, keepdims=True), jnp.add) / m_safe
        # Best response p(eta) ~ relu(v - eta); eta solves chi2(p||1/m)==size.
        # eta_lo below is always feasible: chi2(eta_lo) <= 0.5 var / (mean-eta)^2.
        eta_lo = seg_min - jnp.sqrt(var_v / (2.0 * size_f))
        eta_hi = seg_max

        def body(lo, hi):
            mid = 0.5 * (lo + hi)
            w = jnp.maximum(Vm - mid, 0.0)
            s1 = _fold(jnp.sum(w, axis=-1, keepdims=True), jnp.add)
            s2 = _fold(jnp.sum(w * w, axis=-1, keepdims=True), jnp.add)
            # chi2(p||uniform) = 0.5 * (m * sum p_i^2 - 1),   p = w / s1
            chi2 = 0.5 * (m_safe * s2 / jnp.maximum(s1 * s1, tiny) - 1.0)
            too_big = chi2 > size_f
            return jnp.where(too_big, lo, mid), jnp.where(too_big, mid, hi)

        lo, hi = _bisect(eta_lo, eta_hi, body, n_iter, full_unroll)
        eta = 0.5 * (lo + hi)
        w = jnp.maximum(Vm - eta, 0.0)
        s1 = _fold(jnp.sum(w, axis=-1, keepdims=True), jnp.add)
        wv = _fold(jnp.sum(w * Vm, axis=-1, keepdims=True), jnp.add)
        losses = jnp.where(s1 > 1e-20, wv / jnp.maximum(s1, tiny), seg_max)
        # Relative (scale-invariant) guard for (near-)constant segments.
        scale2 = jnp.maximum(jnp.maximum(seg_max * seg_max, seg_min * seg_min),
                             tiny)
        losses = jnp.where(var_v > 1e-10 * scale2, losses, mean_v)

    losses = jnp.where(nonempty, losses, 0.0)       # (8,1); rows 0..3 = segments

    avg_term = losses[0:1, 0:1]
    full = losses[1:2, 0:1]
    first = losses[2:3, 0:1]
    second = losses[3:4, 0:1]
    out_ref[...] = (avg_term +
                    jnp.float32(inv_pmf) * (full - 0.5 * (first + second)))


def multi_level_robust_loss(v, *, geometry='cvar', size=0.1, reg=0.0,
                            batch_size_pmf=None, batch_size_min=4,
                            n_iter=None):
    """Multi-level estimator of a robust loss; mirrors
    MultiLevelRobustLoss(RobustLoss(size, reg, geometry), pmf, bs_min).forward(v)."""
    assert geometry in ('cvar', 'chi-square')
    assert reg == 0.0  # TODO(synk): reg > 0 (penalized dual) not implemented
    n = int(v.shape[0])
    assert n >= 2 and batch_size_min % 2 == 0
    if geometry == 'cvar' and size > 0:
        assert size <= 1.0
    half_min = min(batch_size_min // 2, n)
    if batch_size_pmf is None:
        batch_size_pmf = lambda m: float(batch_size_min) / (2.0 * m)
    inv_pmf = 1.0 / float(batch_size_pmf(n))
    if n_iter is None:
        n_iter = 20 if geometry == 'cvar' else 22   # >= needed f32 accuracy

    v32 = v.astype(jnp.float32)
    if size == 0.0:  # ERM: the robust loss degenerates to the mean
        avg = jnp.mean(v32[:half_min])
        delta = jnp.mean(v32) - 0.5 * (jnp.mean(v32[:n // 2]) +
                                       jnp.mean(v32[n // 2:]))
        return avg + inv_pmf * delta

    # Lane-dense layout: pad to a multiple of 256 and fold into (2, nh) so the
    # two lane-halves of v land on sublane pairs (k, k+4) inside the kernel.
    npad = ((n + 255) // 256) * 256
    nh = npad // 2
    v2 = jnp.pad(v32, (0, npad - n)).reshape(2, nh)   # fusable pad, no .at[].set

    full_unroll = nh <= 1024
    # ~1 live (8, nh) f32 array in the loop + setup transients + dbl-buf input.
    est_bytes = (6 * _NROWS * nh + 2 * 2 * nh) * 4
    vmem_limit = int(min(48 * 1024 * 1024, max(32 * 1024 * 1024, 2 * est_bytes)))

    kernel = functools.partial(
        _ml_robust_kernel, geometry=geometry, size=float(size),
        inv_pmf=float(inv_pmf), n=n, half_min=half_min, nh=nh,
        n_iter=int(n_iter), full_unroll=full_unroll)

    out = pl.pallas_call(
        kernel,
        out_shape=jax.ShapeDtypeStruct((1, 1), jnp.float32),
        grid=(1,),
        in_specs=[pl.BlockSpec((2, nh), lambda i: (0, 0))],
        out_specs=pl.BlockSpec((1, 1), lambda i: (0, 0)),
        compiler_params=pltpu.CompilerParams(
            dimension_semantics=("arbitrary",),
            vmem_limit_bytes=vmem_limit),
    )(v2)
    return out[0, 0]


# ----------------------- pure NumPy reference (f64) ------------------------

def _cvar_ref(u, size):
    u = np.asarray(u, np.float64)
    m = u.shape[0]
    if size == 0:
        return float(u.mean())
    cap = 1.0 / (size * m)
    idx = np.argsort(-u)
    cutoff = int(size * m)
    p = np.zeros(m)
    p[idx[:cutoff]] = cap
    if cutoff < m:
        p[idx[cutoff]] = 1.0 - cutoff * cap
    return float(p @ u)


def _chi2_ref(u, size):
    u = np.asarray(u, np.float64)
    m = u.shape[0]
    if u.max() - u.min() < 1e-12:
        return float(u.mean())

    def chi2(eta):
        w = np.maximum(u - eta, 0.0)
        p = w / w.sum()
        return 0.5 * np.mean((m * p - 1.0) ** 2)

    if chi2(u.max() - 1e-9 * (u.max() - u.min())) <= size:
        return float(u.max())            # failsafe: point mass on the max
    lo = u.min() - np.sqrt(u.var() / (2.0 * size))
    hi = u.max()
    for _ in range(100):
        mid = 0.5 * (lo + hi)
        if chi2(mid) > size:
            hi = mid
        else:
            lo = mid
    eta = 0.5 * (lo + hi)
    w = np.maximum(u - eta, 0.0)
    p = w / w.sum()
    return float(p @ u)


def _ml_ref(v, geometry, size, batch_size_pmf, batch_size_min):
    v = np.asarray(v, np.float64)
    n = v.shape[0]
    rl = _cvar_ref if geometry == 'cvar' else _chi2_ref
    hm = min(batch_size_min // 2, n)
    avg = rl(v[:hm], size)
    delta = rl(v, size) - 0.5 * (rl(v[:n // 2], size) + rl(v[n // 2:], size))
    return avg + delta / batch_size_pmf(n)


if __name__ == "__main__":
    key = jax.random.PRNGKey(0)
    k1, k2 = jax.random.split(key)

    batch_size_min = 8
    pmf = lambda m: float(batch_size_min) / (2.0 * m)

    # Small batch of per-example losses.
    n = 16
    v = jax.random.uniform(k1, (n,), jnp.float32, 0.0, 2.0)
    v_np = np.asarray(v)

    # --- CVaR geometry ---
    loss_cvar = multi_level_robust_loss(
        v, geometry='cvar', size=0.3, batch_size_pmf=pmf,
        batch_size_min=batch_size_min)
    jax.block_until_ready(loss_cvar)
    ref_cvar = _ml_ref(v_np, 'cvar', 0.3, pmf, batch_size_min)
    assert np.isfinite(float(loss_cvar))
    assert np.allclose(float(loss_cvar), ref_cvar, rtol=5e-4, atol=5e-4), \
        (float(loss_cvar), ref_cvar)

    # --- chi-square geometry ---
    loss_chi2 = multi_level_robust_loss(
        v, geometry='chi-square', size=1.0, batch_size_pmf=pmf,
        batch_size_min=batch_size_min)
    jax.block_until_ready(loss_chi2)
    ref_chi2 = _ml_ref(v_np, 'chi-square', 1.0, pmf, batch_size_min)
    assert np.isfinite(float(loss_chi2))
    assert np.allclose(float(loss_chi2), ref_chi2, rtol=2e-3, atol=2e-3), \
        (float(loss_chi2), ref_chi2)

    # --- non-multiple-of-128 batch (exercises lane padding / masking) ---
    n2 = 200
    v2 = jax.random.uniform(k2, (n2,), jnp.float32, 0.0, 2.0)
    loss2 = multi_level_robust_loss(
        v2, geometry='cvar', size=0.3, batch_size_pmf=pmf,
        batch_size_min=batch_size_min)
    jax.block_until_ready(loss2)
    ref2 = _ml_ref(np.asarray(v2), 'cvar', 0.3, pmf, batch_size_min)
    assert np.allclose(float(loss2), ref2, rtol=5e-4, atol=5e-4), \
        (float(loss2), ref2)

    # --- duplicated values exactly at the CVaR threshold (size*m integer) ---
    v3 = jnp.concatenate([jnp.ones((8,), jnp.float32),
                          jnp.zeros((8,), jnp.float32)])
    loss3 = multi_level_robust_loss(
        v3, geometry='cvar', size=0.25, batch_size_pmf=pmf,
        batch_size_min=batch_size_min)
    jax.block_until_ready(loss3)
    ref3 = _ml_ref(np.asarray(v3), 'cvar', 0.25, pmf, batch_size_min)
    assert np.allclose(float(loss3), ref3, rtol=1e-4, atol=1e-4), \
        (float(loss3), ref3)

    print("KERNEL_OK")
</pallas_src>

<mosaic_0001>
module attributes {stable_mosaic.version = 11 : i64} {
  func.func @_ml_robust_kernel(%arg0: i32, %arg1: memref<2x128xf32, #tpu.memory_space<vmem>>, %arg2: memref<1x1xf32, #tpu.memory_space<vmem>>) attributes {dimension_semantics = [#tpu.dimension_semantics<arbitrary>], iteration_bounds = array<i64: 1>, scalar_prefetch = 0 : i64, scratch_operands = 0 : i64, tpu.core_type = #tpu.core_type<tc>, window_params = [{pipeline_mode = #tpu.pipeline_mode<synchronous>, transform_indices = @transform_0, window_bounds = array<i64: 2, 128>}, {pipeline_mode = #tpu.pipeline_mode<synchronous>, transform_indices = @transform_1, window_bounds = array<i64: 1, 1>}]} {
    %0 = tpu.iota {dimensions = array<i32: 1>} : vector<8x128xi32>
    %1 = tpu.iota {dimensions = array<i32: 0>} : vector<8x128xi32>
    %c3_i32 = arith.constant 3 : i32
    %2 = vector.broadcast %c3_i32 : i32 to vector<8x128xi32>
    %3 = arith.andi %1, %2 : vector<8x128xi32>
    %c4_i32 = arith.constant 4 : i32
    %4 = vector.broadcast %c4_i32 : i32 to vector<8x128xi32>
    %5 = arith.cmpi sge, %1, %4 : vector<8x128xi32>
    %c128_i32 = arith.constant 128 : i32
    %c0_i32 = arith.constant 0 : i32
    %6 = vector.broadcast %c128_i32 : i32 to vector<8x128xi32>
    %7 = vector.broadcast %c0_i32 : i32 to vector<8x128xi32>
    %8 = arith.select %5, %6, %7 : vector<8x128xi1>, vector<8x128xi32>
    %9 = arith.addi %0, %8 : vector<8x128xi32>
    %c3_i32_0 = arith.constant 3 : i32
    %10 = vector.broadcast %c3_i32_0 : i32 to vector<8x128xi32>
    %11 = arith.cmpi eq, %3, %10 : vector<8x128xi32>
    %c8_i32 = arith.constant 8 : i32
    %c0_i32_1 = arith.constant 0 : i32
    %12 = vector.broadcast %c8_i32 : i32 to vector<8x128xi32>
    %13 = vector.broadcast %c0_i32_1 : i32 to vector<8x128xi32>
    %14 = arith.select %11, %12, %13 : vector<8x128xi1>, vector<8x128xi32>
    %c0_i32_2 = arith.constant 0 : i32
    %15 = vector.broadcast %c0_i32_2 : i32 to vector<8x128xi32>
    %16 = arith.cmpi eq, %3, %15 : vector<8x128xi32>
    %c2_i32 = arith.constant 2 : i32
    %17 = vector.broadcast %c2_i32 : i32 to vector<8x128xi32>
    %18 = arith.cmpi eq, %3, %17 : vector<8x128xi32>
    %c8_i32_3 = arith.constant 8 : i32
    %c16_i32 = arith.constant 16 : i32
    %19 = vector.broadcast %c8_i32_3 : i32 to vector<8x128xi32>
    %20 = vector.broadcast %c16_i32 : i32 to vector<8x128xi32>
    %21 = arith.select %18, %19, %20 : vector<8x128xi1>, vector<8x128xi32>
    %c4_i32_4 = arith.constant 4 : i32
    %22 = vector.broadcast %c4_i32_4 : i32 to vector<8x128xi32>
    %23 = arith.select %16, %22, %21 : vector<8x128xi1>, vector<8x128xi32>
    %24 = arith.cmpi sge, %9, %14 : vector<8x128xi32>
    %25 = arith.cmpi slt, %9, %23 : vector<8x128xi32>
    %26 = arith.andi %24, %25 : vector<8x128xi1>
    %c0 = arith.constant 0 : index
    %c0_5 = arith.constant 0 : index
    %27 = vector.load %arg1[%c0, %c0_5] : memref<2x128xf32, #tpu.memory_space<vmem>>, vector<2x128xf32>
    %c4_i32_6 = arith.constant 4 : i32
    %28 = vector.broadcast %c4_i32_6 : i32 to vector<8x128xi32>
    %29 = arith.cmpi slt, %1, %28 : vector<8x128xi32>
    %30 = vector.extract_strided_slice %27 {offsets = [0, 0], sizes = [1, 128], strides = [1, 1]} : vector<2x128xf32> to vector<1x128xf32>
    %31 = vector.extract_strided_slice %27 {offsets = [1, 0], sizes = [1, 128], strides = [1, 1]} : vector<2x128xf32> to vector<1x128xf32>
    %32 = vector.shape_cast %30 : vector<1x128xf32> to vector<1x128xf32>
    %33 = vector.broadcast %32 : vector<1x128xf32> to vector<8x128xf32>
    %34 = vector.shape_cast %31 : vector<1x128xf32> to vector<1x128xf32>
    %35 = vector.broadcast %34 : vector<1x128xf32> to vector<8x128xf32>
    %36 = arith.select %29, %33, %35 : vector<8x128xi1>, vector<8x128xf32>
    %cst = arith.constant 0.000000e+00 : f32
    %cst_7 = arith.constant 1.000000e+30 : f32
    %37 = arith.subf %cst, %cst_7 : f32
    %38 = vector.broadcast %37 : f32 to vector<8x128xf32>
    %39 = arith.select %26, %36, %38 : vector<8x128xi1>, vector<8x128xf32>
    %40 = arith.extui %26 : vector<8x128xi1> to vector<8x128xi32>
    %41 = arith.sitofp %40 : vector<8x128xi32> to vector<8x128xf32>
    %cst_8 = arith.constant dense<0.000000e+00> : vector<8xf32>
    %42 = vector.multi_reduction <add>, %41, %cst_8 [1] : vector<8x128xf32> to vector<8xf32>
    %43 = vector.shape_cast %42 : vector<8xf32> to vector<8x1xf32>
    %c4_i32_9 = arith.constant 4 : i32
    %44 = tpu.dynamic_rotate %43 by %c4_i32_9 dim 0 : vector<8x1xf32>, i32 -> vector<8x1xf32>
    %45 = arith.addf %43, %44 : vector<8x1xf32>
    %cst_10 = arith.constant 1.000000e+00 : f32
    %46 = vector.broadcast %cst_10 : f32 to vector<8x1xf32>
    %47 = arith.maximumf %45, %46 : vector<8x1xf32>
    %cst_11 = arith.constant 5.000000e-01 : f32
    %48 = vector.broadcast %cst_11 : f32 to vector<8x1xf32>
    %49 = arith.cmpf ogt, %45, %48 : vector<8x1xf32>
    %cst_12 = arith.constant dense<0xFF800000> : vector<8xf32>
    %50 = vector.multi_reduction <maximumf>, %39, %cst_12 [1] : vector<8x128xf32> to vector<8xf32>
    %51 = vector.shape_cast %50 : vector<8xf32> to vector<8x1xf32>
    %c4_i32_13 = arith.constant 4 : i32
    %52 = tpu.dynamic_rotate %51 by %c4_i32_13 dim 0 : vector<8x1xf32>, i32 -> vector<8x1xf32>
    %53 = arith.maximumf %51, %52 : vector<8x1xf32>
    %cst_14 = arith.constant 1.000000e+30 : f32
    %54 = vector.broadcast %cst_14 : f32 to vector<8x128xf32>
    %55 = arith.select %26, %36, %54 : vector<8x128xi1>, vector<8x128xf32>
    %cst_15 = arith.constant dense<0x7F800000> : vector<8xf32>
    %56 = vector.multi_reduction <minimumf>, %55, %cst_15 [1] : vector<8x128xf32> to vector<8xf32>
    %57 = vector.shape_cast %56 : vector<8xf32> to vector<8x1xf32>
    %c4_i32_16 = arith.constant 4 : i32
    %58 = tpu.dynamic_rotate %57 by %c4_i32_16 dim 0 : vector<8x1xf32>, i32 -> vector<8x1xf32>
    %59 = arith.minimumf %57, %58 : vector<8x1xf32>
    %cst_17 = arith.constant 0.000000e+00 : f32
    %60 = vector.broadcast %cst_17 : f32 to vector<8x1xf32>
    %61 = arith.select %49, %53, %60 : vector<8x1xi1>, vector<8x1xf32>
    %cst_18 = arith.constant 0.000000e+00 : f32
    %62 = vector.broadcast %cst_18 : f32 to vector<8x1xf32>
    %63 = arith.select %49, %59, %62 : vector<8x1xi1>, vector<8x1xf32>
    %cst_19 = arith.constant 3.000000e-01 : f32
    %64 = vector.broadcast %cst_19 : f32 to vector<8x1xf32>
    %65 = arith.mulf %64, %47 : vector<8x1xf32>
    %66 = arith.addf %63, %61 : vector<8x1xf32>
    %cst_20 = arith.constant 5.000000e-01 : f32
    %67 = vector.broadcast %cst_20 : f32 to vector<8x1xf32>
    %68 = arith.mulf %67, %66 : vector<8x1xf32>
    %69 = vector.broadcast %68 : vector<8x1xf32> to vector<8x128xf32>
    %70 = arith.cmpf ogt, %39, %69 : vector<8x128xf32>
    %71 = arith.extui %70 : vector<8x128xi1> to vector<8x128xi32>
    %72 = arith.sitofp %71 : vector<8x128xi32> to vector<8x128xf32>
    %cst_21 = arith.constant dense<0.000000e+00> : vector<8xf32>
    %73 = vector.multi_reduction <add>, %72, %cst_21 [1] : vector<8x128xf32> to vector<8xf32>
    %74 = vector.shape_cast %73 : vector<8xf32> to vector<8x1xf32>
    %c4_i32_22 = arith.constant 4 : i32
    %75 = tpu.dynamic_rotate %74 by %c4_i32_22 dim 0 : vector<8x1xf32>, i32 -> vector<8x1xf32>
    %76 = arith.addf %74, %75 : vector<8x1xf32>
    %77 = arith.cmpf ogt, %76, %65 : vector<8x1xf32>
    %78 = arith.select %77, %68, %63 : vector<8x1xi1>, vector<8x1xf32>
    %79 = arith.select %77, %61, %68 : vector<8x1xi1>, vector<8x1xf32>
    %80 = arith.addf %78, %79 : vector<8x1xf32>
    %cst_23 = arith.constant 5.000000e-01 : f32
    %81 = vector.broadcast %cst_23 : f32 to vector<8x1xf32>
    %82 = arith.mulf %81, %80 : vector<8x1xf32>
    %83 = vector.broadcast %82 : vector<8x1xf32> to vector<8x128xf32>
    %84 = arith.cmpf ogt, %39, %83 : vector<8x128xf32>
    %85 = arith.extui %84 : vector<8x128xi1> to vector<8x128xi32>
    %86 = arith.sitofp %85 : vector<8x128xi32> to vector<8x128xf32>
    %cst_24 = arith.constant dense<0.000000e+00> : vector<8xf32>
    %87 = vector.multi_reduction <add>, %86, %cst_24 [1] : vector<8x128xf32> to vector<8xf32>
    %88 = vector.shape_cast %87 : vector<8xf32> to vector<8x1xf32>
    %c4_i32_25 = arith.constant 4 : i32
    %89 = tpu.dynamic_rotate %88 by %c4_i32_25 dim 0 : vector<8x1xf32>, i32 -> vector<8x1xf32>
    %90 = arith.addf %88, %89 : vector<8x1xf32>
    %91 = arith.cmpf ogt, %90, %65 : vector<8x1xf32>
    %92 = arith.select %91, %82, %78 : vector<8x1xi1>, vector<8x1xf32>
    %93 = arith.select %91, %79, %82 : vector<8x1xi1>, vector<8x1xf32>
    %94 = arith.addf %92, %93 : vector<8x1xf32>
    %cst_26 = arith.constant 5.000000e-01 : f32
    %95 = vector.broadcast %cst_26 : f32 to vector<8x1xf32>
    %96 = arith.mulf %95, %94 : vector<8x1xf32>
    %97 = vector.broadcast %96 : vector<8x1xf32> to vector<8x128xf32>
    %98 = arith.cmpf ogt, %39, %97 : vector<8x128xf32>
    %99 = arith.extui %98 : vector<8x128xi1> to vector<8x128xi32>
    %100 = arith.sitofp %99 : vector<8x128xi32> to vector<8x128xf32>
    %cst_27 = arith.constant dense<0.000000e+00> : vector<8xf32>
    %101 = vector.multi_reduction <add>, %100, %cst_27 [1] : vector<8x128xf32> to vector<8xf32>
    %102 = vector.shape_cast %101 : vector<8xf32> to vector<8x1xf32>
    %c4_i32_28 = arith.constant 4 : i32
    %103 = tpu.dynamic_rotate %102 by %c4_i32_28 dim 0 : vector<8x1xf32>, i32 -> vector<8x1xf32>
    %104 = arith.addf %102, %103 : vector<8x1xf32>
    %105 = arith.cmpf ogt, %104, %65 : vector<8x1xf32>
    %106 = arith.select %105, %96, %92 : vector<8x1xi1>, vector<8x1xf32>
    %107 = arith.select %105, %93, %96 : vector<8x1xi1>, vector<8x1xf32>
    %108 = arith.addf %106, %107 : vector<8x1xf32>
    %cst_29 = arith.constant 5.000000e-01 : f32
    %109 = vector.broadcast %cst_29 : f32 to vector<8x1xf32>
    %110 = arith.mulf %109, %108 : vector<8x1xf32>
    %111 = vector.broadcast %110 : vector<8x1xf32> to vector<8x128xf32>
    %112 = arith.cmpf ogt, %39, %111 : vector<8x128xf32>
    %113 = arith.extui %112 : vector<8x128xi1> to vector<8x128xi32>
    %114 = arith.sitofp %113 : vector<8x128xi32> to vector<8x128xf32>
    %cst_30 = arith.constant dense<0.000000e+00> : vector<8xf32>
    %115 = vector.multi_reduction <add>, %114, %cst_30 [1] : vector<8x128xf32> to vector<8xf32>
    %116 = vector.shape_cast %115 : vector<8xf32> to vector<8x1xf32>
    %c4_i32_31 = arith.constant 4 : i32
    %117 = tpu.dynamic_rotate %116 by %c4_i32_31 dim 0 : vector<8x1xf32>, i32 -> vector<8x1xf32>
    %118 = arith.addf %116, %117 : vector<8x1xf32>
    %119 = arith.cmpf ogt, %118, %65 : vector<8x1xf32>
    %120 = arith.select %119, %110, %106 : vector<8x1xi1>, vector<8x1xf32>
    %121 = arith.select %119, %107, %110 : vector<8x1xi1>, vector<8x1xf32>
    %122 = arith.addf %120, %121 : vector<8x1xf32>
    %cst_32 = arith.constant 5.000000e-01 : f32
    %123 = vector.broadcast %cst_32 : f32 to vector<8x1xf32>
    %124 = arith.mulf %123, %122 : vector<8x1xf32>
    %125 = vector.broadcast %124 : vector<8x1xf32> to vector<8x128xf32>
    %126 = arith.cmpf ogt, %39, %125 : vector<8x128xf32>
    %127 = arith.extui %126 : vector<8x128xi1> to vector<8x128xi32>
    %128 = arith.sitofp %127 : vector<8x128xi32> to vector<8x128xf32>
    %cst_33 = arith.constant dense<0.000000e+00> : vector<8xf32>
    %129 = vector.multi_reduction <add>, %128, %cst_33 [1] : vector<8x128xf32> to vector<8xf32>
    %130 = vector.shape_cast %129 : vector<8xf32> to vector<8x1xf32>
    %c4_i32_34 = arith.constant 4 : i32
    %131 = tpu.dynamic_rotate %130 by %c4_i32_34 dim 0 : vector<8x1xf32>, i32 -> vector<8x1xf32>
    %132 = arith.addf %130, %131 : vector<8x1xf32>
    %133 = arith.cmpf ogt, %132, %65 : vector<8x1xf32>
    %134 = arith.select %133, %124, %120 : vector<8x1xi1>, vector<8x1xf32>
    %135 = arith.select %133, %121, %124 : vector<8x1xi1>, vector<8x1xf32>
    %136 = arith.addf %134, %135 : vector<8x1xf32>
    %cst_35 = arith.constant 5.000000e-01 : f32
    %137 = vector.broadcast %cst_35 : f32 to vector<8x1xf32>
    %138 = arith.mulf %137, %136 : vector<8x1xf32>
    %139 = vector.broadcast %138 : vector<8x1xf32> to vector<8x128xf32>
    %140 = arith.cmpf ogt, %39, %139 : vector<8x128xf32>
    %141 = arith.extui %140 : vector<8x128xi1> to vector<8x128xi32>
    %142 = arith.sitofp %141 : vector<8x128xi32> to vector<8x128xf32>
    %cst_36 = arith.constant dense<0.000000e+00> : vector<8xf32>
    %143 = vector.multi_reduction <add>, %142, %cst_36 [1] : vector<8x128xf32> to vector<8xf32>
    %144 = vector.shape_cast %143 : vector<8xf32> to vector<8x1xf32>
    %c4_i32_37 = arith.constant 4 : i32
    %145 = tpu.dynamic_rotate %144 by %c4_i32_37 dim 0 : vector<8x1xf32>, i32 -> vector<8x1xf32>
    %146 = arith.addf %144, %145 : vector<8x1xf32>
    %147 = arith.cmpf ogt, %146, %65 : vector<8x1xf32>
    %148 = arith.select %147, %138, %134 : vector<8x1xi1>, vector<8x1xf32>
    %149 = arith.select %147, %135, %138 : vector<8x1xi1>, vector<8x1xf32>
    %150 = arith.addf %148, %149 : vector<8x1xf32>
    %cst_38 = arith.constant 5.000000e-01 : f32
    %151 = vector.broadcast %cst_38 : f32 to vector<8x1xf32>
    %152 = arith.mulf %151, %150 : vector<8x1xf32>
    %153 = vector.broadcast %152 : vector<8x1xf32> to vector<8x128xf32>
    %154 = arith.cmpf ogt, %39, %153 : vector<8x128xf32>
    %155 = arith.extui %154 : vector<8x128xi1> to vector<8x128xi32>
    %156 = arith.sitofp %155 : vector<8x128xi32> to vector<8x128xf32>
    %cst_39 = arith.constant dense<0.000000e+00> : vector<8xf32>
    %157 = vector.multi_reduction <add>, %156, %cst_39 [1] : vector<8x128xf32> to vector<8xf32>
    %158 = vector.shape_cast %157 : vector<8xf32> to vector<8x1xf32>
    %c4_i32_40 = arith.constant 4 : i32
    %159 = tpu.dynamic_rotate %158 by %c4_i32_40 dim 0 : vector<8x1xf32>, i32 -> vector<8x1xf32>
    %160 = arith.addf %158, %159 : vector<8x1xf32>
    %161 = arith.cmpf ogt, %160, %65 : vector<8x1xf32>
    %162 = arith.select %161, %152, %148 : vector<8x1xi1>, vector<8x1xf32>
    %163 = arith.select %161, %149, %152 : vector<8x1xi1>, vector<8x1xf32>
    %164 = arith.addf %162, %163 : vector<8x1xf32>
    %cst_41 = arith.constant 5.000000e-01 : f32
    %165 = vector.broadcast %cst_41 : f32 to vector<8x1xf32>
    %166 = arith.mulf %165, %164 : vector<8x1xf32>
    %167 = vector.broadcast %166 : vector<8x1xf32> to vector<8x128xf32>
    %168 = arith.cmpf ogt, %39, %167 : vector<8x128xf32>
    %169 = arith.extui %168 : vector<8x128xi1> to vector<8x128xi32>
    %170 = arith.sitofp %169 : vector<8x128xi32> to vector<8x128xf32>
    %cst_42 = arith.constant dense<0.000000e+00> : vector<8xf32>
    %171 = vector.multi_reduction <add>, %170, %cst_42 [1] : vector<8x128xf32> to vector<8xf32>
    %172 = vector.shape_cast %171 : vector<8xf32> to vector<8x1xf32>
    %c4_i32_43 = arith.constant 4 : i32
    %173 = tpu.dynamic_rotate %172 by %c4_i32_43 dim 0 : vector<8x1xf32>, i32 -> vector<8x1xf32>
    %174 = arith.addf %172, %173 : vector<8x1xf32>
    %175 = arith.cmpf ogt, %174, %65 : vector<8x1xf32>
    %176 = arith.select %175, %166, %162 : vector<8x1xi1>, vector<8x1xf32>
    %177 = arith.select %175, %163, %166 : vector<8x1xi1>, vector<8x1xf32>
    %178 = arith.addf %176, %177 : vector<8x1xf32>
    %cst_44 = arith.constant 5.000000e-01 : f32
    %179 = vector.broadcast %cst_44 : f32 to vector<8x1xf32>
    %180 = arith.mulf %179, %178 : vector<8x1xf32>
    %181 = vector.broadcast %180 : vector<8x1xf32> to vector<8x128xf32>
    %182 = arith.cmpf ogt, %39, %181 : vector<8x128xf32>
    %183 = arith.extui %182 : vector<8x128xi1> to vector<8x128xi32>
    %184 = arith.sitofp %183 : vector<8x128xi32> to vector<8x128xf32>
    %cst_45 = arith.constant dense<0.000000e+00> : vector<8xf32>
    %185 = vector.multi_reduction <add>, %184, %cst_45 [1] : vector<8x128xf32> to vector<8xf32>
    %186 = vector.shape_cast %185 : vector<8xf32> to vector<8x1xf32>
    %c4_i32_46 = arith.constant 4 : i32
    %187 = tpu.dynamic_rotate %186 by %c4_i32_46 dim 0 : vector<8x1xf32>, i32 -> vector<8x1xf32>
    %188 = arith.addf %186, %187 : vector<8x1xf32>
    %189 = arith.cmpf ogt, %188, %65 : vector<8x1xf32>
    %190 = arith.select %189, %180, %176 : vector<8x1xi1>, vector<8x1xf32>
    %191 = arith.select %189, %177, %180 : vector<8x1xi1>, vector<8x1xf32>
    %192 = arith.addf %190, %191 : vector<8x1xf32>
    %cst_47 = arith.constant 5.000000e-01 : f32
    %193 = vector.broadcast %cst_47 : f32 to vector<8x1xf32>
    %194 = arith.mulf %193, %192 : vector<8x1xf32>
    %195 = vector.broadcast %194 : vector<8x1xf32> to vector<8x128xf32>
    %196 = arith.cmpf ogt, %39, %195 : vector<8x128xf32>
    %197 = arith.extui %196 : vector<8x128xi1> to vector<8x128xi32>
    %198 = arith.sitofp %197 : vector<8x128xi32> to vector<8x128xf32>
    %cst_48 = arith.constant dense<0.000000e+00> : vector<8xf32>
    %199 = vector.multi_reduction <add>, %198, %cst_48 [1] : vector<8x128xf32> to vector<8xf32>
    %200 = vector.shape_cast %199 : vector<8xf32> to vector<8x1xf32>
    %c4_i32_49 = arith.constant 4 : i32
    %201 = tpu.dynamic_rotate %200 by %c4_i32_49 dim 0 : vector<8x1xf32>, i32 -> vector<8x1xf32>
    %202 = arith.addf %200, %201 : vector<8x1xf32>
    %203 = arith.cmpf ogt, %202, %65 : vector<8x1xf32>
    %204 = arith.select %203, %194, %190 : vector<8x1xi1>, vector<8x1xf32>
    %205 = arith.select %203, %191, %194 : vector<8x1xi1>, vector<8x1xf32>
    %206 = arith.addf %204, %205 : vector<8x1xf32>
    %cst_50 = arith.constant 5.000000e-01 : f32
    %207 = vector.broadcast %cst_50 : f32 to vector<8x1xf32>
    %208 = arith.mulf %207, %206 : vector<8x1xf32>
    %209 = vector.broadcast %208 : vector<8x1xf32> to vector<8x128xf32>
    %210 = arith.cmpf ogt, %39, %209 : vector<8x128xf32>
    %211 = arith.extui %210 : vector<8x128xi1> to vector<8x128xi32>
    %212 = arith.sitofp %211 : vector<8x128xi32> to vector<8x128xf32>
    %cst_51 = arith.constant dense<0.000000e+00> : vector<8xf32>
    %213 = vector.multi_reduction <add>, %212, %cst_51 [1] : vector<8x128xf32> to vector<8xf32>
    %214 = vector.shape_cast %213 : vector<8xf32> to vector<8x1xf32>
    %c4_i32_52 = arith.constant 4 : i32
    %215 = tpu.dynamic_rotate %214 by %c4_i32_52 dim 0 : vector<8x1xf32>, i32 -> vector<8x1xf32>
    %216 = arith.addf %214, %215 : vector<8x1xf32>
    %217 = arith.cmpf ogt, %216, %65 : vector<8x1xf32>
    %218 = arith.select %217, %208, %204 : vector<8x1xi1>, vector<8x1xf32>
    %219 = arith.select %217, %205, %208 : vector<8x1xi1>, vector<8x1xf32>
    %220 = arith.addf %218, %219 : vector<8x1xf32>
    %cst_53 = arith.constant 5.000000e-01 : f32
    %221 = vector.broadcast %cst_53 : f32 to vector<8x1xf32>
    %222 = arith.mulf %221, %220 : vector<8x1xf32>
    %223 = vector.broadcast %222 : vector<8x1xf32> to vector<8x128xf32>
    %224 = arith.cmpf ogt, %39, %223 : vector<8x128xf32>
    %225 = arith.extui %224 : vector<8x128xi1> to vector<8x128xi32>
    %226 = arith.sitofp %225 : vector<8x128xi32> to vector<8x128xf32>
    %cst_54 = arith.constant dense<0.000000e+00> : vector<8xf32>
    %227 = vector.multi_reduction <add>, %226, %cst_54 [1] : vector<8x128xf32> to vector<8xf32>
    %228 = vector.shape_cast %227 : vector<8xf32> to vector<8x1xf32>
    %c4_i32_55 = arith.constant 4 : i32
    %229 = tpu.dynamic_rotate %228 by %c4_i32_55 dim 0 : vector<8x1xf32>, i32 -> vector<8x1xf32>
    %230 = arith.addf %228, %229 : vector<8x1xf32>
    %231 = arith.cmpf ogt, %230, %65 : vector<8x1xf32>
    %232 = arith.select %231, %222, %218 : vector<8x1xi1>, vector<8x1xf32>
    %233 = arith.select %231, %219, %222 : vector<8x1xi1>, vector<8x1xf32>
    %234 = arith.addf %232, %233 : vector<8x1xf32>
    %cst_56 = arith.constant 5.000000e-01 : f32
    %235 = vector.broadcast %cst_56 : f32 to vector<8x1xf32>
    %236 = arith.mulf %235, %234 : vector<8x1xf32>
    %237 = vector.broadcast %236 : vector<8x1xf32> to vector<8x128xf32>
    %238 = arith.cmpf ogt, %39, %237 : vector<8x128xf32>
    %239 = arith.extui %238 : vector<8x128xi1> to vector<8x128xi32>
    %240 = arith.sitofp %239 : vector<8x128xi32> to vector<8x128xf32>
    %cst_57 = arith.constant dense<0.000000e+00> : vector<8xf32>
    %241 = vector.multi_reduction <add>, %240, %cst_57 [1] : vector<8x128xf32> to vector<8xf32>
    %242 = vector.shape_cast %241 : vector<8xf32> to vector<8x1xf32>
    %c4_i32_58 = arith.constant 4 : i32
    %243 = tpu.dynamic_rotate %242 by %c4_i32_58 dim 0 : vector<8x1xf32>, i32 -> vector<8x1xf32>
    %244 = arith.addf %242, %243 : vector<8x1xf32>
    %245 = arith.cmpf ogt, %244, %65 : vector<8x1xf32>
    %246 = arith.select %245, %236, %232 : vector<8x1xi1>, vector<8x1xf32>
    %247 = arith.select %245, %233, %236 : vector<8x1xi1>, vector<8x1xf32>
    %248 = arith.addf %246, %247 : vector<8x1xf32>
    %cst_59 = arith.constant 5.000000e-01 : f32
    %249 = vector.broadcast %cst_59 : f32 to vector<8x1xf32>
    %250 = arith.mulf %249, %248 : vector<8x1xf32>
    %251 = vector.broadcast %250 : vector<8x1xf32> to vector<8x128xf32>
    %252 = arith.cmpf ogt, %39, %251 : vector<8x128xf32>
    %253 = arith.extui %252 : vector<8x128xi1> to vector<8x128xi32>
    %254 = arith.sitofp %253 : vector<8x128xi32> to vector<8x128xf32>
    %cst_60 = arith.constant dense<0.000000e+00> : vector<8xf32>
    %255 = vector.multi_reduction <add>, %254, %cst_60 [1] : vector<8x128xf32> to vector<8xf32>
    %256 = vector.shape_cast %255 : vector<8xf32> to vector<8x1xf32>
    %c4_i32_61 = arith.constant 4 : i32
    %257 = tpu.dynamic_rotate %256 by %c4_i32_61 dim 0 : vector<8x1xf32>, i32 -> vector<8x1xf32>
    %258 = arith.addf %256, %257 : vector<8x1xf32>
    %259 = arith.cmpf ogt, %258, %65 : vector<8x1xf32>
    %260 = arith.select %259, %250, %246 : vector<8x1xi1>, vector<8x1xf32>
    %261 = arith.select %259, %247, %250 : vector<8x1xi1>, vector<8x1xf32>
    %262 = arith.addf %260, %261 : vector<8x1xf32>
    %cst_62 = arith.constant 5.000000e-01 : f32
    %263 = vector.broadcast %cst_62 : f32 to vector<8x1xf32>
    %264 = arith.mulf %263, %262 : vector<8x1xf32>
    %265 = vector.broadcast %264 : vector<8x1xf32> to vector<8x128xf32>
    %266 = arith.cmpf ogt, %39, %265 : vector<8x128xf32>
    %267 = arith.extui %266 : vector<8x128xi1> to vector<8x128xi32>
    %268 = arith.sitofp %267 : vector<8x128xi32> to vector<8x128xf32>
    %cst_63 = arith.constant dense<0.000000e+00> : vector<8xf32>
    %269 = vector.multi_reduction <add>, %268, %cst_63 [1] : vector<8x128xf32> to vector<8xf32>
    %270 = vector.shape_cast %269 : vector<8xf32> to vector<8x1xf32>
    %c4_i32_64 = arith.constant 4 : i32
    %271 = tpu.dynamic_rotate %270 by %c4_i32_64 dim 0 : vector<8x1xf32>, i32 -> vector<8x1xf32>
    %272 = arith.addf %270, %271 : vector<8x1xf32>
    %273 = arith.cmpf ogt, %272, %65 : vector<8x1xf32>
    %274 = arith.select %273, %264, %260 : vector<8x1xi1>, vector<8x1xf32>
    %275 = arith.select %273, %261, %264 : vector<8x1xi1>, vector<8x1xf32>
    %276 = arith.addf %274, %275 : vector<8x1xf32>
    %cst_65 = arith.constant 5.000000e-01 : f32
    %277 = vector.broadcast %cst_65 : f32 to vector<8x1xf32>
    %278 = arith.mulf %277, %276 : vector<8x1xf32>
    %279 = vector.broadcast %278 : vector<8x1xf32> to vector<8x128xf32>
    %280 = arith.cmpf ogt, %39, %279 : vector<8x128xf32>
    %281 = arith.extui %280 : vector<8x128xi1> to vector<8x128xi32>
    %282 = arith.sitofp %281 : vector<8x128xi32> to vector<8x128xf32>
    %cst_66 = arith.constant dense<0.000000e+00> : vector<8xf32>
    %283 = vector.multi_reduction <add>, %282, %cst_66 [1] : vector<8x128xf32> to vector<8xf32>
    %284 = vector.shape_cast %283 : vector<8xf32> to vector<8x1xf32>
    %c4_i32_67 = arith.constant 4 : i32
    %285 = tpu.dynamic_rotate %284 by %c4_i32_67 dim 0 : vector<8x1xf32>, i32 -> vector<8x1xf32>
    %286 = arith.addf %284, %285 : vector<8x1xf32>
    %287 = arith.cmpf ogt, %286, %65 : vector<8x1xf32>
    %288 = arith.select %287, %278, %274 : vector<8x1xi1>, vector<8x1xf32>
    %289 = arith.select %287, %275, %278 : vector<8x1xi1>, vector<8x1xf32>
    %290 = arith.addf %288, %289 : vector<8x1xf32>
    %cst_68 = arith.constant 5.000000e-01 : f32
    %291 = vector.broadcast %cst_68 : f32 to vector<8x1xf32>
    %292 = arith.mulf %291, %290 : vector<8x1xf32>
    %293 = vector.broadcast %292 : vector<8x1xf32> to vector<8x128xf32>
    %294 = arith.cmpf ogt, %39, %293 : vector<8x128xf32>
    %295 = arith.extui %294 : vector<8x128xi1> to vector<8x128xi32>
    %296 = arith.sitofp %295 : vector<8x128xi32> to vector<8x128xf32>
    %cst_69 = arith.constant dense<0.000000e+00> : vector<8xf32>
    %297 = vector.multi_reduction <add>, %296, %cst_69 [1] : vector<8x128xf32> to vector<8xf32>
    %298 = vector.shape_cast %297 : vector<8xf32> to vector<8x1xf32>
    %c4_i32_70 = arith.constant 4 : i32
    %299 = tpu.dynamic_rotate %298 by %c4_i32_70 dim 0 : vector<8x1xf32>, i32 -> vector<8x1xf32>
    %300 = arith.addf %298, %299 : vector<8x1xf32>
    %301 = arith.cmpf ogt, %300, %65 : vector<8x1xf32>
    %302 = arith.select %301, %292, %288 : vector<8x1xi1>, vector<8x1xf32>
    %303 = arith.select %301, %289, %292 : vector<8x1xi1>, vector<8x1xf32>
    %304 = arith.addf %302, %303 : vector<8x1xf32>
    %cst_71 = arith.constant 5.000000e-01 : f32
    %305 = vector.broadcast %cst_71 : f32 to vector<8x1xf32>
    %306 = arith.mulf %305, %304 : vector<8x1xf32>
    %307 = vector.broadcast %306 : vector<8x1xf32> to vector<8x128xf32>
    %308 = arith.cmpf ogt, %39, %307 : vector<8x128xf32>
    %309 = arith.extui %308 : vector<8x128xi1> to vector<8x128xi32>
    %310 = arith.sitofp %309 : vector<8x128xi32> to vector<8x128xf32>
    %cst_72 = arith.constant dense<0.000000e+00> : vector<8xf32>
    %311 = vector.multi_reduction <add>, %310, %cst_72 [1] : vector<8x128xf32> to vector<8xf32>
    %312 = vector.shape_cast %311 : vector<8xf32> to vector<8x1xf32>
    %c4_i32_73 = arith.constant 4 : i32
    %313 = tpu.dynamic_rotate %312 by %c4_i32_73 dim 0 : vector<8x1xf32>, i32 -> vector<8x1xf32>
    %314 = arith.addf %312, %313 : vector<8x1xf32>
    %315 = arith.cmpf ogt, %314, %65 : vector<8x1xf32>
    %316 = arith.select %315, %306, %302 : vector<8x1xi1>, vector<8x1xf32>
    %317 = arith.select %315, %303, %306 : vector<8x1xi1>, vector<8x1xf32>
    %318 = arith.addf %316, %317 : vector<8x1xf32>
    %cst_74 = arith.constant 5.000000e-01 : f32
    %319 = vector.broadcast %cst_74 : f32 to vector<8x1xf32>
    %320 = arith.mulf %319, %318 : vector<8x1xf32>
    %321 = vector.broadcast %320 : vector<8x1xf32> to vector<8x128xf32>
    %322 = arith.cmpf ogt, %39, %321 : vector<8x128xf32>
    %323 = arith.extui %322 : vector<8x128xi1> to vector<8x128xi32>
    %324 = arith.sitofp %323 : vector<8x128xi32> to vector<8x128xf32>
    %cst_75 = arith.constant dense<0.000000e+00> : vector<8xf32>
    %325 = vector.multi_reduction <add>, %324, %cst_75 [1] : vector<8x128xf32> to vector<8xf32>
    %326 = vector.shape_cast %325 : vector<8xf32> to vector<8x1xf32>
    %c4_i32_76 = arith.constant 4 : i32
    %327 = tpu.dynamic_rotate %326 by %c4_i32_76 dim 0 : vector<8x1xf32>, i32 -> vector<8x1xf32>
    %328 = arith.addf %326, %327 : vector<8x1xf32>
    %329 = arith.cmpf ogt, %328, %65 : vector<8x1xf32>
    %330 = arith.select %329, %320, %316 : vector<8x1xi1>, vector<8x1xf32>
    %331 = arith.select %329, %317, %320 : vector<8x1xi1>, vector<8x1xf32>
    %332 = arith.addf %330, %331 : vector<8x1xf32>
    %cst_77 = arith.constant 5.000000e-01 : f32
    %333 = vector.broadcast %cst_77 : f32 to vector<8x1xf32>
    %334 = arith.mulf %333, %332 : vector<8x1xf32>
    %335 = vector.broadcast %334 : vector<8x1xf32> to vector<8x128xf32>
    %336 = arith.cmpf ogt, %39, %335 : vector<8x128xf32>
    %337 = arith.extui %336 : vector<8x128xi1> to vector<8x128xi32>
    %338 = arith.sitofp %337 : vector<8x128xi32> to vector<8x128xf32>
    %cst_78 = arith.constant dense<0.000000e+00> : vector<8xf32>
    %339 = vector.multi_reduction <add>, %338, %cst_78 [1] : vector<8x128xf32> to vector<8xf32>
    %340 = vector.shape_cast %339 : vector<8xf32> to vector<8x1xf32>
    %c4_i32_79 = arith.constant 4 : i32
    %341 = tpu.dynamic_rotate %340 by %c4_i32_79 dim 0 : vector<8x1xf32>, i32 -> vector<8x1xf32>
    %342 = arith.addf %340, %341 : vector<8x1xf32>
    %343 = arith.cmpf ogt, %342, %65 : vector<8x1xf32>
    %344 = arith.select %343, %334, %330 : vector<8x1xi1>, vector<8x1xf32>
    %345 = arith.select %343, %331, %334 : vector<8x1xi1>, vector<8x1xf32>
    %346 = arith.addf %344, %345 : vector<8x1xf32>
    %cst_80 = arith.constant 5.000000e-01 : f32
    %347 = vector.broadcast %cst_80 : f32 to vector<8x1xf32>
    %348 = arith.mulf %347, %346 : vector<8x1xf32>
    %349 = vector.broadcast %348 : vector<8x1xf32> to vector<8x128xf32>
    %350 = arith.subf %39, %349 : vector<8x128xf32>
    %cst_81 = arith.constant 0.000000e+00 : f32
    %351 = vector.broadcast %cst_81 : f32 to vector<8x128xf32>
    %352 = arith.maximumf %350, %351 : vector<8x128xf32>
    %cst_82 = arith.constant dense<0.000000e+00> : vector<8xf32>
    %353 = vector.multi_reduction <add>, %352, %cst_82 [1] : vector<8x128xf32> to vector<8xf32>
    %354 = vector.shape_cast %353 : vector<8xf32> to vector<8x1xf32>
    %c4_i32_83 = arith.constant 4 : i32
    %355 = tpu.dynamic_rotate %354 by %c4_i32_83 dim 0 : vector<8x1xf32>, i32 -> vector<8x1xf32>
    %356 = arith.addf %354, %355 : vector<8x1xf32>
    %357 = arith.divf %356, %65 : vector<8x1xf32>
    %358 = arith.addf %348, %357 : vector<8x1xf32>
    %cst_84 = arith.constant 0.000000e+00 : f32
    %359 = vector.broadcast %cst_84 : f32 to vector<8x1xf32>
    %360 = arith.select %49, %358, %359 : vector<8x1xi1>, vector<8x1xf32>
    %361 = vector.extract_strided_slice %360 {offsets = [0, 0], sizes = [1, 1], strides = [1, 1]} : vector<8x1xf32> to vector<1x1xf32>
    %362 = vector.extract_strided_slice %360 {offsets = [1, 0], sizes = [1, 1], strides = [1, 1]} : vector<8x1xf32> to vector<1x1xf32>
    %363 = vector.extract_strided_slice %360 {offsets = [2, 0], sizes = [1, 1], strides = [1, 1]} : vector<8x1xf32> to vector<1x1xf32>
    %364 = vector.extract_strided_slice %360 {offsets = [3, 0], sizes = [1, 1], strides = [1, 1]} : vector<8x1xf32> to vector<1x1xf32>
    %365 = arith.addf %363, %364 : vector<1x1xf32>
    %cst_85 = arith.constant 5.000000e-01 : f32
    %366 = vector.broadcast %cst_85 : f32 to vector<1x1xf32>
    %367 = arith.mulf %366, %365 : vector<1x1xf32>
    %368 = arith.subf %362, %367 : vector<1x1xf32>
    %cst_86 = arith.constant 4.000000e+00 : f32
    %369 = vector.broadcast %cst_86 : f32 to vector<1x1xf32>
    %370 = arith.mulf %369, %368 : vector<1x1xf32>
    %371 = arith.addf %361, %370 : vector<1x1xf32>
    %c0_87 = arith.constant 0 : index
    %c0_88 = arith.constant 0 : index
    %372 = vector.load %arg2[%c0_87, %c0_88] : memref<1x1xf32, #tpu.memory_space<vmem>>, vector<1x1xf32>
    tpu.vector_store %arg2[%c0_87, %c0_88], %371 {strides = array<i32>} : memref<1x1xf32, #tpu.memory_space<vmem>>, vector<1x1xf32>,
    return
  }
  func.func @transform_0(%arg0: i32) -> (i32, i32) {
    %c0_i32 = arith.constant 0 : i32
    %c0_i32_0 = arith.constant 0 : i32
    %c0_i32_1 = arith.constant 0 : i32
    return %c0_i32, %c0_i32_0 : i32, i32
  }
  func.func @transform_1(%arg0: i32) -> (i32, i32) {
    %c0_i32 = arith.constant 0 : i32
    %c0_i32_0 = arith.constant 0 : i32
    %c0_i32_1 = arith.constant 0 : i32
    return %c0_i32, %c0_i32_0 : i32, i32
  }
}

</mosaic_0001>

<llo_original>
// kernel: tpu_custom_call.1
$region0: #{tpu_custom_call.1}
  #allocation0 [shape = 'u32[]', space=smem, size = 0x4, offset = 0x4, fixed_abs, tag = 'smem constant byte address 0x4 - core index']
  #allocation1 [shape = 'u32[144,128]{1,0:T(1,128)}', space=vmem, size = 0x12000, scoped, tag = 'internal scratch']
  %s0 = inlined_call_operand.hbm [shape: f32[2,128], index: 0, kind: input, shape index: {}]
  %s1 = inlined_call_operand.hbm [shape: f32[1,1], index: 1, kind: output, shape index: {}]
  %s2 = sld [smem:[#allocation0]]
  $region18: #{tpu_custom_call.1} parent=0
    _
  %s4 = ssub.s32 1, %s2
  %s5 = scalar_select 0, %s4, %s2
  $region1: #{tpu_custom_call.1} parent=0
    #allocation2 [shape = 'u8[1024]{0}', space=vmem, size = 0x400, scoped, tag = 'input window, operand 0, single buffered']
    #allocation3 [shape = 's32[1]{0}', space=sflag, size = 0x4, scoped, tag = 'scoped memory for tpu_custom_call.1']
    #allocation4 [shape = 's32[1]{0}', space=sflag, size = 0x4, scoped, tag = 'scoped memory for tpu_custom_call.1']
    #allocation5 [shape = 'u8[512]{0}', space=vmem, size = 0x400, scoped, tag = 'output window, operand 0, single buffered']
    %6 = vsyncpa [#allocation3], 0
    %7 = vsyncpa [#allocation4], 0
    // Predicated region
    $region2: #{tpu_custom_call.1} parent=1 // pred_check
      _
    $region3: #{tpu_custom_call.1} parent=1 // pred_check_branch
      %9 = sbr.rel (0) target = $region5
    $region4: #{tpu_custom_call.1} parent=1 // pred_region
      %s11 = ssub.s32 32, 32
      %12 = vsyncadd [#allocation3], %s11
      %s14 = sshll.u32 [#allocation2], 4
      %s15 = int_to_ptr.vmem [resolvable:$true] %s14
      %17 = dma.hbm_to_vmem [thread:$0]  %s0, 32, %s15, [#allocation3]
    $region5: #{tpu_custom_call.1} parent=1 // pred_fallthru
      _
    // Predicated region
    $region6: #{tpu_custom_call.1} parent=1 // pred_check
      _
    $region7: #{tpu_custom_call.1} parent=1 // pred_check_branch
      %19 = sbr.rel (0) target = $region9
    $region8: #{tpu_custom_call.1} parent=1 // pred_region
      %20 = dma.done [#allocation3], 32
    $region9: #{tpu_custom_call.1} parent=1 // pred_fallthru
      _
    %v21 = vlaneseq
    %v22 = vand.u32 %v21, 127
    %v23 = vlaneseq
    %v24 = vshrl.u32 %v23, 7
    %v25 = vand.u32 %v24, 3
    %vm26 = vcmp.ge.s32.totalorder %v24, 4
    %v27 = vsel %vm26, 128, 0
    %v28 = vadd.s32 %v22, %v27
    %vm29 = vcmp.eq.s32.totalorder %v25, 3
    %v30 = vsel %vm29, 8, 0
    %vm31 = vcmp.eq.s32.totalorder %v25, 0
    %vm32 = vcmp.eq.s32.totalorder %v25, 2
    %v33 = vsel %vm32, 8, 16
    %v34 = vsel %vm31, 4, %v33
    %vm35 = vcmp.ge.s32.totalorder %v28, %v30
    %vm36 = vcmp.lt.s32.totalorder %v28, %v34
    %vm37 = vmand %vm35, %vm36
    %v38 = vld [vmem:[#allocation2] sm:$0x3]
    %vm39 = vcmp.lt.s32.totalorder %v24, 4
    %v40 = vlaneseq
    %v41 = vshrl.u32 %v40, 7
    %v42 = vsub.s32 0, %v41
    %v43 = vrot.slane %v38, %v42
    %v44 = vlaneseq
    %v45 = vshrl.u32 %v44, 7
    %v46 = vsub.s32 1, %v45
    %v47 = vrot.slane %v38, %v46
    %v48 = vsel %vm39, %v43, %v47
    %v49 = vsel %vm37, %v48, -1e+30
    %v50 = vsel %vm37, 1, 0
    %v51 = vcvt.s32.f32 %v50
    %52 = vadd.xlane.f32.xlu0 %v51
    %v53 = vpop.xlane.xlu0 %52
    %v54 = vrot.slane %v53, 4
    %v55 = vadd.f32 %v53, %v54
    %v56 = vmax.f32 %v55, 1.0
    %vm57 = vcmp.gt.f32.partialorder %v55, 0.5
    %58 = vmax.xlane.f32.xlu0 %v49
    %v59 = vpop.xlane.xlu0 %58
    %v60 = vrot.slane %v59, 4
    %v61 = vmax.f32 %v59, %v60
    %v62 = vsel %vm37, %v48, 1e+30
    %63 = vmin.xlane.f32.xlu0 %v62
    %v64 = vpop.xlane.xlu0 %63
    %v65 = vrot.slane %v64, 4
    %v66 = vmin.f32 %v64, %v65
    %v67 = vsel %vm57, %v61, 0.0
    %v68 = vsel %vm57, %v66, 0.0
    %v69 = vmul.f32 %v56, 0.3
    %v70 = vadd.f32 %v68, %v67
    %v71 = vmul.f32 %v70, 0.5
    %73 = vset.pattern.permute.xlu0 0
    %74 = vperm.xlu0 %73, %v71
    %v75 = vpop.permute.xlu0 %74
    %vm77 = vcmp.gt.f32.partialorder %v49, %v75
    %v78 = vsel %vm77, 1, 0
    %v79 = vcvt.s32.f32 %v78
    %80 = vadd.xlane.f32.xlu0 %v79
    %v81 = vpop.xlane.xlu0 %80
    %v82 = vrot.slane %v81, 4
    %v83 = vadd.f32 %v81, %v82
    %vm84 = vcmp.gt.f32.partialorder %v83, %v69
    %v85 = vsel %vm84, %v71, %v68
    %v86 = vsel %vm84, %v67, %v71
    %v87 = vadd.f32 %v85, %v86
    %v88 = vmul.f32 %v87, 0.5
    %90 = vset.pattern.permute.xlu0 0
    %91 = vperm.xlu0 %90, %v88
    %v92 = vpop.permute.xlu0 %91
    %vm94 = vcmp.gt.f32.partialorder %v49, %v92
    %v95 = vsel %vm94, 1, 0
    %v96 = vcvt.s32.f32 %v95
    %97 = vadd.xlane.f32.xlu0 %v96
    %v98 = vpop.xlane.xlu0 %97
    %v99 = vrot.slane %v98, 4
    %v100 = vadd.f32 %v98, %v99
    %vm101 = vcmp.gt.f32.partialorder %v100, %v69
    %v102 = vsel %vm101, %v88, %v85
    %v103 = vsel %vm101, %v86, %v88
    %v104 = vadd.f32 %v102, %v103
    %v105 = vmul.f32 %v104, 0.5
    %107 = vset.pattern.permute.xlu0 0
    %108 = vperm.xlu0 %107, %v105
    %v109 = vpop.permute.xlu0 %108
    %vm111 = vcmp.gt.f32.partialorder %v49, %v109
    %v112 = vsel %vm111, 1, 0
    %v113 = vcvt.s32.f32 %v112
    %114 = vadd.xlane.f32.xlu0 %v113
    %v115 = vpop.xlane.xlu0 %114
    %v116 = vrot.slane %v115, 4
    %v117 = vadd.f32 %v115, %v116
    %vm118 = vcmp.gt.f32.partialorder %v117, %v69
    %v119 = vsel %vm118, %v105, %v102
    %v120 = vsel %vm118, %v103, %v105
    %v121 = vadd.f32 %v119, %v120
    %v122 = vmul.f32 %v121, 0.5
    %124 = vset.pattern.permute.xlu0 0
    %125 = vperm.xlu0 %124, %v122
    %v126 = vpop.permute.xlu0 %125
    %vm128 = vcmp.gt.f32.partialorder %v49, %v126
    %v129 = vsel %vm128, 1, 0
    %v130 = vcvt.s32.f32 %v129
    %131 = vadd.xlane.f32.xlu0 %v130
    %v132 = vpop.xlane.xlu0 %131
    %v133 = vrot.slane %v132, 4
    %v134 = vadd.f32 %v132, %v133
    %vm135 = vcmp.gt.f32.partialorder %v134, %v69
    %v136 = vsel %vm135, %v122, %v119
    %v137 = vsel %vm135, %v120, %v122
    %v138 = vadd.f32 %v136, %v137
    %v139 = vmul.f32 %v138, 0.5
    %141 = vset.pattern.permute.xlu0 0
    %142 = vperm.xlu0 %141, %v139
    %v143 = vpop.permute.xlu0 %142
    %vm145 = vcmp.gt.f32.partialorder %v49, %v143
    %v146 = vsel %vm145, 1, 0
    %v147 = vcvt.s32.f32 %v146
    %148 = vadd.xlane.f32.xlu0 %v147
    %v149 = vpop.xlane.xlu0 %148
    %v150 = vrot.slane %v149, 4
    %v151 = vadd.f32 %v149, %v150
    %vm152 = vcmp.gt.f32.partialorder %v151, %v69
    %v153 = vsel %vm152, %v139, %v136
    %v154 = vsel %vm152, %v137, %v139
    %v155 = vadd.f32 %v153, %v154
    %v156 = vmul.f32 %v155, 0.5
    %158 = vset.pattern.permute.xlu0 0
    %159 = vperm.xlu0 %158, %v156
    %v160 = vpop.permute.xlu0 %159
    %vm162 = vcmp.gt.f32.partialorder %v49, %v160
    %v163 = vsel %vm162, 1, 0
    %v164 = vcvt.s32.f32 %v163
    %165 = vadd.xlane.f32.xlu0 %v164
    %v166 = vpop.xlane.xlu0 %165
    %v167 = vrot.slane %v166, 4
    %v168 = vadd.f32 %v166, %v167
    %vm169 = vcmp.gt.f32.partialorder %v168, %v69
    %v170 = vsel %vm169, %v156, %v153
    %v171 = vsel %vm169, %v154, %v156
    %v172 = vadd.f32 %v170, %v171
    %v173 = vmul.f32 %v172, 0.5
    %175 = vset.pattern.permute.xlu0 0
    %176 = vperm.xlu0 %175, %v173
    %v177 = vpop.permute.xlu0 %176
    %vm179 = vcmp.gt.f32.partialorder %v49, %v177
    %v180 = vsel %vm179, 1, 0
    %v181 = vcvt.s32.f32 %v180
    %182 = vadd.xlane.f32.xlu0 %v181
    %v183 = vpop.xlane.xlu0 %182
    %v184 = vrot.slane %v183, 4
    %v185 = vadd.f32 %v183, %v184
    %vm186 = vcmp.gt.f32.partialorder %v185, %v69
    %v187 = vsel %vm186, %v173, %v170
    %v188 = vsel %vm186, %v171, %v173
    %v189 = vadd.f32 %v187, %v188
    %v190 = vmul.f32 %v189, 0.5
    %192 = vset.pattern.permute.xlu0 0
    %193 = vperm.xlu0 %192, %v190
    %v194 = vpop.permute.xlu0 %193
    %vm196 = vcmp.gt.f32.partialorder %v49, %v194
    %v197 = vsel %vm196, 1, 0
    %v198 = vcvt.s32.f32 %v197
    %199 = vadd.xlane.f32.xlu0 %v198
    %v200 = vpop.xlane.xlu0 %199
    %v201 = vrot.slane %v200, 4
    %v202 = vadd.f32 %v200, %v201
    %vm203 = vcmp.gt.f32.partialorder %v202, %v69
    %v204 = vsel %vm203, %v190, %v187
    %v205 = vsel %vm203, %v188, %v190
    %v206 = vadd.f32 %v204, %v205
    %v207 = vmul.f32 %v206, 0.5
    %209 = vset.pattern.permute.xlu0 0
    %210 = vperm.xlu0 %209, %v207
    %v211 = vpop.permute.xlu0 %210
    %vm213 = vcmp.gt.f32.partialorder %v49, %v211
    %v214 = vsel %vm213, 1, 0
    %v215 = vcvt.s32.f32 %v214
    %216 = vadd.xlane.f32.xlu0 %v215
    %v217 = vpop.xlane.xlu0 %216
    %v218 = vrot.slane %v217, 4
    %v219 = vadd.f32 %v217, %v218
    %vm220 = vcmp.gt.f32.partialorder %v219, %v69
    %v221 = vsel %vm220, %v207, %v204
    %v222 = vsel %vm220, %v205, %v207
    %v223 = vadd.f32 %v221, %v222
    %v224 = vmul.f32 %v223, 0.5
    %226 = vset.pattern.permute.xlu0 0
    %227 = vperm.xlu0 %226, %v224
    %v228 = vpop.permute.xlu0 %227
    %vm230 = vcmp.gt.f32.partialorder %v49, %v228
    %v231 = vsel %vm230, 1, 0
    %v232 = vcvt.s32.f32 %v231
    %233 = vadd.xlane.f32.xlu0 %v232
    %v234 = vpop.xlane.xlu0 %233
    %v235 = vrot.slane %v234, 4
    %v236 = vadd.f32 %v234, %v235
    %vm237 = vcmp.gt.f32.partialorder %v236, %v69
    %v238 = vsel %vm237, %v224, %v221
    %v239 = vsel %vm237, %v222, %v224
    %v240 = vadd.f32 %v238, %v239
    %v241 = vmul.f32 %v240, 0.5
    %243 = vset.pattern.permute.xlu0 0
    %244 = vperm.xlu0 %243, %v241
    %v245 = vpop.permute.xlu0 %244
    %vm247 = vcmp.gt.f32.partialorder %v49, %v245
    %v248 = vsel %vm247, 1, 0
    %v249 = vcvt.s32.f32 %v248
    %250 = vadd.xlane.f32.xlu0 %v249
    %v251 = vpop.xlane.xlu0 %250
    %v252 = vrot.slane %v251, 4
    %v253 = vadd.f32 %v251, %v252
    %vm254 = vcmp.gt.f32.partialorder %v253, %v69
    %v255 = vsel %vm254, %v241, %v238
    %v256 = vsel %vm254, %v239, %v241
    %v257 = vadd.f32 %v255, %v256
    %v258 = vmul.f32 %v257, 0.5
    %260 = vset.pattern.permute.xlu0 0
    %261 = vperm.xlu0 %260, %v258
    %v262 = vpop.permute.xlu0 %261
    %vm264 = vcmp.gt.f32.partialorder %v49, %v262
    %v265 = vsel %vm264, 1, 0
    %v266 = vcvt.s32.f32 %v265
    %267 = vadd.xlane.f32.xlu0 %v266
    %v268 = vpop.xlane.xlu0 %267
    %v269 = vrot.slane %v268, 4
    %v270 = vadd.f32 %v268, %v269
    %vm271 = vcmp.gt.f32.partialorder %v270, %v69
    %v272 = vsel %vm271, %v258, %v255
    %v273 = vsel %vm271, %v256, %v258
    %v274 = vadd.f32 %v272, %v273
    %v275 = vmul.f32 %v274, 0.5
    %277 = vset.pattern.permute.xlu0 0
    %278 = vperm.xlu0 %277, %v275
    %v279 = vpop.permute.xlu0 %278
    %vm281 = vcmp.gt.f32.partialorder %v49, %v279
    %v282 = vsel %vm281, 1, 0
    %v283 = vcvt.s32.f32 %v282
    %284 = vadd.xlane.f32.xlu0 %v283
    %v285 = vpop.xlane.xlu0 %284
    %v286 = vrot.slane %v285, 4
    %v287 = vadd.f32 %v285, %v286
    %vm288 = vcmp.gt.f32.partialorder %v287, %v69
    %v289 = vsel %vm288, %v275, %v272
    %v290 = vsel %vm288, %v273, %v275
    %v291 = vadd.f32 %v289, %v290
    %v292 = vmul.f32 %v291, 0.5
    %294 = vset.pattern.permute.xlu0 0
    %295 = vperm.xlu0 %294, %v292
    %v296 = vpop.permute.xlu0 %295
    %vm298 = vcmp.gt.f32.partialorder %v49, %v296
    %v299 = vsel %vm298, 1, 0
    %v300 = vcvt.s32.f32 %v299
    %301 = vadd.xlane.f32.xlu0 %v300
    %v302 = vpop.xlane.xlu0 %301
    %v303 = vrot.slane %v302, 4
    %v304 = vadd.f32 %v302, %v303
    %vm305 = vcmp.gt.f32.partialorder %v304, %v69
    %v306 = vsel %vm305, %v292, %v289
    %v307 = vsel %vm305, %v290, %v292
    %v308 = vadd.f32 %v306, %v307
    %v309 = vmul.f32 %v308, 0.5
    %311 = vset.pattern.permute.xlu0 0
    %312 = vperm.xlu0 %311, %v309
    %v313 = vpop.permute.xlu0 %312
    %vm315 = vcmp.gt.f32.partialorder %v49, %v313
    %v316 = vsel %vm315, 1, 0
    %v317 = vcvt.s32.f32 %v316
    %318 = vadd.xlane.f32.xlu0 %v317
    %v319 = vpop.xlane.xlu0 %318
    %v320 = vrot.slane %v319, 4
    %v321 = vadd.f32 %v319, %v320
    %vm322 = vcmp.gt.f32.partialorder %v321, %v69
    %v323 = vsel %vm322, %v309, %v306
    %v324 = vsel %vm322, %v307, %v309
    %v325 = vadd.f32 %v323, %v324
    %v326 = vmul.f32 %v325, 0.5
    %328 = vset.pattern.permute.xlu0 0
    %329 = vperm.xlu0 %328, %v326
    %v330 = vpop.permute.xlu0 %329
    %vm332 = vcmp.gt.f32.partialorder %v49, %v330
    %v333 = vsel %vm332, 1, 0
    %v334 = vcvt.s32.f32 %v333
    %335 = vadd.xlane.f32.xlu0 %v334
    %v336 = vpop.xlane.xlu0 %335
    %v337 = vrot.slane %v336, 4
    %v338 = vadd.f32 %v336, %v337
    %vm339 = vcmp.gt.f32.partialorder %v338, %v69
    %v340 = vsel %vm339, %v326, %v323
    %v341 = vsel %vm339, %v324, %v326
    %v342 = vadd.f32 %v340, %v341
    %v343 = vmul.f32 %v342, 0.5
    %345 = vset.pattern.permute.xlu0 0
    %346 = vperm.xlu0 %345, %v343
    %v347 = vpop.permute.xlu0 %346
    %vm349 = vcmp.gt.f32.partialorder %v49, %v347
    %v350 = vsel %vm349, 1, 0
    %v351 = vcvt.s32.f32 %v350
    %352 = vadd.xlane.f32.xlu0 %v351
    %v353 = vpop.xlane.xlu0 %352
    %v354 = vrot.slane %v353, 4
    %v355 = vadd.f32 %v353, %v354
    %vm356 = vcmp.gt.f32.partialorder %v355, %v69
    %v357 = vsel %vm356, %v343, %v340
    %v358 = vsel %vm356, %v341, %v343
    %v359 = vadd.f32 %v357, %v358
    %v360 = vmul.f32 %v359, 0.5
    %362 = vset.pattern.permute.xlu0 0
    %363 = vperm.xlu0 %362, %v360
    %v364 = vpop.permute.xlu0 %363
    %vm366 = vcmp.gt.f32.partialorder %v49, %v364
    %v367 = vsel %vm366, 1, 0
    %v368 = vcvt.s32.f32 %v367
    %369 = vadd.xlane.f32.xlu0 %v368
    %v370 = vpop.xlane.xlu0 %369
    %v371 = vrot.slane %v370, 4
    %v372 = vadd.f32 %v370, %v371
    %vm373 = vcmp.gt.f32.partialorder %v372, %v69
    %v374 = vsel %vm373, %v360, %v357
    %v375 = vsel %vm373, %v358, %v360
    %v376 = vadd.f32 %v374, %v375
    %v377 = vmul.f32 %v376, 0.5
    %379 = vset.pattern.permute.xlu0 0
    %380 = vperm.xlu0 %379, %v377
    %v381 = vpop.permute.xlu0 %380
    %vm383 = vcmp.gt.f32.partialorder %v49, %v381
    %v384 = vsel %vm383, 1, 0
    %v385 = vcvt.s32.f32 %v384
    %386 = vadd.xlane.f32.xlu0 %v385
    %v387 = vpop.xlane.xlu0 %386
    %v388 = vrot.slane %v387, 4
    %v389 = vadd.f32 %v387, %v388
    %vm390 = vcmp.gt.f32.partialorder %v389, %v69
    %v391 = vsel %vm390, %v377, %v374
    %v392 = vsel %vm390, %v375, %v377
    %v393 = vadd.f32 %v391, %v392
    %v394 = vmul.f32 %v393, 0.5
    %396 = vset.pattern.permute.xlu0 0
    %397 = vperm.xlu0 %396, %v394
    %v398 = vpop.permute.xlu0 %397
    %vm400 = vcmp.gt.f32.partialorder %v49, %v398
    %v401 = vsel %vm400, 1, 0
    %v402 = vcvt.s32.f32 %v401
    %403 = vadd.xlane.f32.xlu0 %v402
    %v404 = vpop.xlane.xlu0 %403
    %v405 = vrot.slane %v404, 4
    %v406 = vadd.f32 %v404, %v405
    %vm407 = vcmp.gt.f32.partialorder %v406, %v69
    %v408 = vsel %vm407, %v394, %v391
    %v409 = vsel %vm407, %v392, %v394
    %v410 = vadd.f32 %v408, %v409
    %v411 = vmul.f32 %v410, 0.5
    %413 = vset.pattern.permute.xlu0 0
    %414 = vperm.xlu0 %413, %v411
    %v415 = vpop.permute.xlu0 %414
    %v417 = vsub.f32 %v49, %v415
    %v418 = vmax.f32 %v417, 0.0
    %419 = vadd.xlane.f32.xlu0 %v418
    %v420 = vpop.xlane.xlu0 %419
    %v421 = vrot.slane %v420, 4
    %v422 = vadd.f32 %v420, %v421
    %v423 = vrcp.pop %v69
    %v424 = vmul.f32 %v422, %v423
    %v425 = vadd.f32 %v411, %v424
    %v426 = vsel %vm57, %v425, 0.0
    %v428 = vrot.slane %v426, 1
    %v430 = vadd.f32 %v426, %v428
    %v431 = vmul.f32 %v430, 0.5
    %v433 = vrot.slane %v431, 1
    %v435 = vsub.f32 %v426, %v433
    %v436 = vmul.f32 %v435, 4.0
    %v438 = vrot.slane %v436, 1
    %v440 = vadd.f32 %v426, %v438
    %vm441 = vcmask 0
    %442 = vst.msk [vmem:[#allocation5] sm:$0x1] %vm441, %v440
    // Predicated region
    $region10: #{tpu_custom_call.1} parent=1 // pred_check
      _
    $region11: #{tpu_custom_call.1} parent=1 // pred_check_branch
      %444 = sbr.rel (0) target = $region13
    $region12: #{tpu_custom_call.1} parent=1 // pred_region
      %s446 = ssub.s32 16, 16
      %447 = vsyncadd [#allocation4], %s446
      %s449 = sshll.u32 [#allocation5], 4
      %s450 = int_to_ptr.vmem [resolvable:$true] %s449
      %452 = dma.vmem_to_hbm [thread:$0]  %s450, 16, %s1, [#allocation4]
    $region13: #{tpu_custom_call.1} parent=1 // pred_fallthru
      _
    // Predicated region
    $region14: #{tpu_custom_call.1} parent=1 // pred_check
      _
    $region15: #{tpu_custom_call.1} parent=1 // pred_check_branch
      %454 = sbr.rel (0) target = $region17
    $region16: #{tpu_custom_call.1} parent=1 // pred_region
      %455 = dma.done [#allocation4], 16
    $region17: #{tpu_custom_call.1} parent=1 // pred_fallthru
      _
    %456 = vsyncpa [#allocation3], 1
    %457 = vsyncpa [#allocation4], 1

</llo_original>
